<compile_context>
chip_gen: v6e
topology: v6e:2x2x1
jax: 0.10.0
libtpu: 0.0.40
codegen_flags: <defaults>
</compile_context>

<pallas_src>
import functools

import jax
import jax.numpy as jnp
from jax.experimental import pallas as pl
from jax.experimental.pallas import tpu as pltpu


OUT_PAD = 128          # lane-dense output width of the fused second head
VAL_COL = OUT_PAD - 1  # lane holding the value-head output inside the fused head


def _round_up(v, m):
    return ((v + m - 1) // m) * m


def _cdiv(a, b):
    return -(-a // b)


def _dueling_dqn_kernel(n_actions,
                        x_ref,
                        w1_ref, w2_ref, wh1_ref, wh2_ref,
                        b_ref,
                        q_ref):
    # Static slice offsets into the fused bias vector (all 128-aligned).
    h1 = w1_ref.shape[1]          # 512
    h2 = w2_ref.shape[1]          # 256
    hh = wh1_ref.shape[1]         # 256
    op = wh2_ref.shape[1]         # OUT_PAD
    b1 = b_ref[:, 0:h1]
    b2 = b_ref[:, h1:h1 + h2]
    bh1 = b_ref[:, h1 + h2:h1 + h2 + hh]
    bh2 = b_ref[:, h1 + h2 + hh:h1 + h2 + hh + op]

    # fc1 + relu : [Bt, D] @ [D, 512]   (bf16 operands, f32 accumulation)
    x = x_ref[...].astype(jnp.bfloat16)
    h = jnp.dot(x, w1_ref[...], preferred_element_type=jnp.float32) + b1
    h = jnp.maximum(h, 0.0)

    # fc2 + relu : [Bt, 512] @ [512, 256]
    h = jnp.dot(h.astype(jnp.bfloat16), w2_ref[...],
                preferred_element_type=jnp.float32) + b2
    h = jnp.maximum(h, 0.0)

    # fused head stage 1 : [Bt, 256] @ [256, 256]
    # columns   0:128 -> value_fc, columns 128:256 -> advantage_fc
    va = jnp.dot(h.astype(jnp.bfloat16), wh1_ref[...],
                 preferred_element_type=jnp.float32) + bh1
    va = jnp.maximum(va, 0.0)

    # fused head stage 2 (block-diagonal, zero-padded): [Bt, 256] @ [256, 128]
    # columns 0:n_actions -> advantage, column VAL_COL -> value, rest exactly 0.
    out = jnp.dot(va.astype(jnp.bfloat16), wh2_ref[...],
                  preferred_element_type=jnp.float32) + bh2

    val = out[:, VAL_COL:VAL_COL + 1]                       # [Bt, 1]
    # Padded lanes are exact zeros, so row-sum minus val == sum of real adv.
    adv_sum = jnp.sum(out, axis=1, keepdims=True) - val
    adv_mean = adv_sum * (1.0 / n_actions)
    # q_j = adv_j + (val - mean) for j < n_actions; other lanes are sliced off
    # in the wrapper (their contents are don't-care).
    q_ref[...] = (out + (val - adv_mean)).astype(q_ref.dtype)


def init_params(key, input_dim, n_actions):
    """nn.Linear-style init U(-1/sqrt(fan_in), 1/sqrt(fan_in)).

    Weights stored transposed: [in_features, out_features]; biases [1, out]."""
    def linear(key, fan_in, fan_out):
        kw, kb = jax.random.split(key)
        bound = 1.0 / jnp.sqrt(fan_in)
        w = jax.random.uniform(kw, (fan_in, fan_out), jnp.float32, -bound, bound)
        b = jax.random.uniform(kb, (1, fan_out), jnp.float32, -bound, bound)
        return w, b

    keys = jax.random.split(key, 6)
    w1, b1 = linear(keys[0], input_dim, 512)
    w2, b2 = linear(keys[1], 512, 256)
    wv1, bv1 = linear(keys[2], 256, 128)
    wv2, bv2 = linear(keys[3], 128, 1)
    wa1, ba1 = linear(keys[4], 256, 128)
    wa2, ba2 = linear(keys[5], 128, n_actions)
    return dict(w1=w1, b1=b1, w2=w2, b2=b2,
                wv1=wv1, bv1=bv1, wv2=wv2, bv2=bv2,
                wa1=wa1, ba1=ba1, wa2=wa2, ba2=ba2)


def pack_params(p, n_actions):
    """Fuse the dueling heads and biases; cast weights to bf16."""
    assert 0 < n_actions <= VAL_COL, "n_actions must fit in the padded lanes"

    # fused head stage 1: concat value_fc / advantage_fc along output axis
    wh1 = jnp.concatenate([p["wv1"], p["wa1"]], axis=1)            # [256, 256]
    bh1 = jnp.concatenate([p["bv1"], p["ba1"]], axis=1)            # [1, 256]

    # fused head stage 2: block-diagonal, zero-padded to 128 output lanes
    wh2 = jnp.zeros((256, OUT_PAD), jnp.float32)
    wh2 = wh2.at[128:256, :n_actions].set(p["wa2"])                # advantage block
    wh2 = wh2.at[0:128, VAL_COL].set(p["wv2"][:, 0])               # value column
    bh2 = jnp.zeros((1, OUT_PAD), jnp.float32)
    bh2 = bh2.at[0, :n_actions].set(p["ba2"][0])
    bh2 = bh2.at[0, VAL_COL].set(p["bv2"][0, 0])

    # The row-sum advantage-mean trick requires the padded lanes to be exact
    # zeros (they are: built from jnp.zeros; bf16 cast of 0.0 is exact).
    assert bool(jnp.all(wh2[:, n_actions:VAL_COL] == 0.0))
    assert bool(jnp.all(bh2[:, n_actions:VAL_COL] == 0.0))

    # Fused bias operand: [1, 512 + 256 + 256 + 128] = [1, 1152], kept f32.
    biases = jnp.concatenate([p["b1"], p["b2"], bh1, bh2], axis=1)

    bf16 = lambda w: w.astype(jnp.bfloat16)
    return dict(w1=bf16(p["w1"]), w2=bf16(p["w2"]),
                wh1=bf16(wh1), wh2=bf16(wh2),
                biases=biases)


def _choose_batch_tile(B, batch_tile):
    """Pick a batch tile: multiple of 8 (sublane-aligned), <= batch_tile, and
    aiming for >= 2 grid steps so v7x's two TensorCores both get work."""
    half = _round_up(max(_cdiv(B, 2), 1), 8)
    if half > B:
        # Tiny batch: a single block that exactly spans the array (full-extent
        # dims are exempt from the 8-row divisibility rule).
        return B, 1
    tile_b = min(batch_tile, half)
    return tile_b, _cdiv(B, tile_b)


def dueling_dqn_forward(x, packed, n_actions, *, batch_tile=512,
                        out_dtype=jnp.bfloat16):
    """x: [B, input_dim] (or [B, ...] which is flattened), any float dtype."""
    if x.ndim > 2:
        x = x.reshape(x.shape[0], -1)
    B, D = x.shape
    assert D == packed["w1"].shape[0], "input_dim mismatch with packed weights"

    # Batch tiling (1-D grid). Weights/biases stay VMEM-resident across steps.
    tile_b, nb = _choose_batch_tile(B, batch_tile)
    B_pad = nb * tile_b   # output rows (last input block may be ragged)

    def pinned(shape):
        return pl.BlockSpec(shape, lambda i: (0, 0))

    grid_spec = pltpu.PrefetchScalarGridSpec(
        num_scalar_prefetch=0,
        grid=(nb,),
        in_specs=[
            pl.BlockSpec((tile_b, D), lambda i: (i, 0)),   # x tile (any dtype)
            pinned(packed["w1"].shape),                    # [D, 512]    bf16
            pinned(packed["w2"].shape),                    # [512, 256]  bf16
            pinned(packed["wh1"].shape),                   # [256, 256]  bf16
            pinned(packed["wh2"].shape),                   # [256, 128]  bf16
            pinned(packed["biases"].shape),                # [1, 1152]   f32
        ],
        out_specs=pl.BlockSpec((tile_b, OUT_PAD), lambda i: (i, 0)),
    )

    q = pl.pallas_call(
        functools.partial(_dueling_dqn_kernel, n_actions),
        out_shape=jax.ShapeDtypeStruct((B_pad, OUT_PAD), out_dtype),
        grid_spec=grid_spec,
        compiler_params=pltpu.CompilerParams(
            dimension_semantics=("parallel",),
            vmem_limit_bytes=32 * 1024 * 1024),
    )(x,
      packed["w1"], packed["w2"], packed["wh1"], packed["wh2"],
      packed["biases"])

    return q[:B, :n_actions].astype(jnp.float32)


def dueling_dqn_reference(x, p):
    """Pure-JAX reference mirroring the PyTorch forward, with the same
    bf16-operand / f32-accumulate dtype flow as the kernel."""
    if x.ndim > 2:
        x = x.reshape(x.shape[0], -1)
    x = x.astype(jnp.float32)

    def lin(a, w, b):
        return jnp.dot(a.astype(jnp.bfloat16), w.astype(jnp.bfloat16),
                       preferred_element_type=jnp.float32) + b

    h = jax.nn.relu(lin(x, p["w1"], p["b1"]))
    h = jax.nn.relu(lin(h, p["w2"], p["b2"]))
    v = jax.nn.relu(lin(h, p["wv1"], p["bv1"]))
    val = lin(v, p["wv2"], p["bv2"])
    a = jax.nn.relu(lin(h, p["wa1"], p["ba1"]))
    adv = lin(a, p["wa2"], p["ba2"])
    return val + (adv - adv.mean(axis=1, keepdims=True))


if __name__ == "__main__":
    # Tetris-like board: width=10, height=20 -> input_dim = 200, 7 actions.
    width, height = 10, 20
    input_dim = width * height
    n_actions = 7
    batch = 2

    key = jax.random.PRNGKey(0)
    k_params, k_x = jax.random.split(key)

    params = init_params(k_params, input_dim, n_actions)
    packed = pack_params(params, n_actions)

    # Board-shaped input [B, H, W]; forward flattens it, as in the PyTorch module.
    x = jax.random.uniform(k_x, (batch, height, width), jnp.float32)

    q = dueling_dqn_forward(x, packed, n_actions)
    q = jax.block_until_ready(q)

    q_ref = dueling_dqn_reference(x, params)
    assert q.shape == (batch, n_actions), q.shape
    # bf16 output quantization + bf16 matmul operands -> loose tolerance.
    assert jnp.allclose(q, q_ref, atol=2e-2, rtol=2e-2), "mismatch vs reference"

    print("KERNEL_OK")
</pallas_src>

<mosaic_0001>
module attributes {stable_mosaic.version = 11 : i64} {
  func.func @_dueling_dqn_kernel(%arg0: i32, %arg1: memref<2x200xf32, #tpu.memory_space<vmem>>, %arg2: memref<200x512xbf16, #tpu.memory_space<vmem>>, %arg3: memref<512x256xbf16, #tpu.memory_space<vmem>>, %arg4: memref<256x256xbf16, #tpu.memory_space<vmem>>, %arg5: memref<256x128xbf16, #tpu.memory_space<vmem>>, %arg6: memref<1x1152xf32, #tpu.memory_space<vmem>>, %arg7: memref<2x128xbf16, #tpu.memory_space<vmem>>) attributes {dimension_semantics = [#tpu.dimension_semantics<parallel>], iteration_bounds = array<i64: 1>, scalar_prefetch = 0 : i64, scratch_operands = 0 : i64, tpu.core_type = #tpu.core_type<tc>, window_params = [{transform_indices = @transform_0, window_bounds = array<i64: 2, 200>}, {pipeline_mode = #tpu.pipeline_mode<synchronous>, transform_indices = @transform_1, window_bounds = array<i64: 200, 512>}, {pipeline_mode = #tpu.pipeline_mode<synchronous>, transform_indices = @transform_2, window_bounds = array<i64: 512, 256>}, {pipeline_mode = #tpu.pipeline_mode<synchronous>, transform_indices = @transform_3, window_bounds = array<i64: 256, 256>}, {pipeline_mode = #tpu.pipeline_mode<synchronous>, transform_indices = @transform_4, window_bounds = array<i64: 256, 128>}, {pipeline_mode = #tpu.pipeline_mode<synchronous>, transform_indices = @transform_5, window_bounds = array<i64: 1, 1152>}, {transform_indices = @transform_6, window_bounds = array<i64: 2, 128>}]} {
    %c0 = arith.constant 0 : index
    %c0_0 = arith.constant 0 : index
    %0 = vector.load %arg6[%c0, %c0_0] : memref<1x1152xf32, #tpu.memory_space<vmem>>, vector<1x512xf32>
    %c0_1 = arith.constant 0 : index
    %c512 = arith.constant 512 : index
    %1 = vector.load %arg6[%c0_1, %c512] : memref<1x1152xf32, #tpu.memory_space<vmem>>, vector<1x256xf32>
    %c0_2 = arith.constant 0 : index
    %c768 = arith.constant 768 : index
    %2 = vector.load %arg6[%c0_2, %c768] : memref<1x1152xf32, #tpu.memory_space<vmem>>, vector<1x256xf32>
    %c0_3 = arith.constant 0 : index
    %c1024 = arith.constant 1024 : index
    %3 = vector.load %arg6[%c0_3, %c1024] : memref<1x1152xf32, #tpu.memory_space<vmem>>, vector<1x128xf32>
    %c0_4 = arith.constant 0 : index
    %c0_5 = arith.constant 0 : index
    %4 = vector.load %arg1[%c0_4, %c0_5] : memref<2x200xf32, #tpu.memory_space<vmem>>, vector<2x200xf32>
    %5 = arith.truncf %4 : vector<2x200xf32> to vector<2x200xbf16>
    %c0_6 = arith.constant 0 : index
    %c0_7 = arith.constant 0 : index
    %6 = vector.load %arg2[%c0_6, %c0_7] : memref<200x512xbf16, #tpu.memory_space<vmem>>, vector<200x512xbf16>
    %cst = arith.constant dense<0.000000e+00> : vector<2x512xf32>
    %7 = tpu.matmul %5, %6, %cst {dimension_numbers = #tpu.dot_dimension_numbers<[1], [0], [0], [1], [0, 0, 1, 1], [], []>} : vector<2x200xbf16>, vector<200x512xbf16>, vector<2x512xf32> -> vector<2x512xf32>
    %8 = vector.broadcast %0 : vector<1x512xf32> to vector<2x512xf32>
    %9 = arith.addf %7, %8 : vector<2x512xf32>
    %cst_8 = arith.constant 0.000000e+00 : f32
    %10 = vector.broadcast %cst_8 : f32 to vector<2x512xf32>
    %11 = arith.maximumf %9, %10 : vector<2x512xf32>
    %12 = arith.truncf %11 : vector<2x512xf32> to vector<2x512xbf16>
    %c0_9 = arith.constant 0 : index
    %c0_10 = arith.constant 0 : index
    %13 = vector.load %arg3[%c0_9, %c0_10] : memref<512x256xbf16, #tpu.memory_space<vmem>>, vector<512x256xbf16>
    %cst_11 = arith.constant dense<0.000000e+00> : vector<2x256xf32>
    %14 = tpu.matmul %12, %13, %cst_11 {dimension_numbers = #tpu.dot_dimension_numbers<[1], [0], [0], [1], [0, 0, 1, 1], [], []>} : vector<2x512xbf16>, vector<512x256xbf16>, vector<2x256xf32> -> vector<2x256xf32>
    %15 = vector.broadcast %1 : vector<1x256xf32> to vector<2x256xf32>
    %16 = arith.addf %14, %15 : vector<2x256xf32>
    %cst_12 = arith.constant 0.000000e+00 : f32
    %17 = vector.broadcast %cst_12 : f32 to vector<2x256xf32>
    %18 = arith.maximumf %16, %17 : vector<2x256xf32>
    %19 = arith.truncf %18 : vector<2x256xf32> to vector<2x256xbf16>
    %c0_13 = arith.constant 0 : index
    %c0_14 = arith.constant 0 : index
    %20 = vector.load %arg4[%c0_13, %c0_14] : memref<256x256xbf16, #tpu.memory_space<vmem>>, vector<256x256xbf16>
    %cst_15 = arith.constant dense<0.000000e+00> : vector<2x256xf32>
    %21 = tpu.matmul %19, %20, %cst_15 {dimension_numbers = #tpu.dot_dimension_numbers<[1], [0], [0], [1], [0, 0, 1, 1], [], []>} : vector<2x256xbf16>, vector<256x256xbf16>, vector<2x256xf32> -> vector<2x256xf32>
    %22 = vector.broadcast %2 : vector<1x256xf32> to vector<2x256xf32>
    %23 = arith.addf %21, %22 : vector<2x256xf32>
    %cst_16 = arith.constant 0.000000e+00 : f32
    %24 = vector.broadcast %cst_16 : f32 to vector<2x256xf32>
    %25 = arith.maximumf %23, %24 : vector<2x256xf32>
    %26 = arith.truncf %25 : vector<2x256xf32> to vector<2x256xbf16>
    %c0_17 = arith.constant 0 : index
    %c0_18 = arith.constant 0 : index
    %27 = vector.load %arg5[%c0_17, %c0_18] : memref<256x128xbf16, #tpu.memory_space<vmem>>, vector<256x128xbf16>
    %cst_19 = arith.constant dense<0.000000e+00> : vector<2x128xf32>
    %28 = tpu.matmul %26, %27, %cst_19 {dimension_numbers = #tpu.dot_dimension_numbers<[1], [0], [0], [1], [0, 0, 1, 1], [], []>} : vector<2x256xbf16>, vector<256x128xbf16>, vector<2x128xf32> -> vector<2x128xf32>
    %29 = vector.broadcast %3 : vector<1x128xf32> to vector<2x128xf32>
    %30 = arith.addf %28, %29 : vector<2x128xf32>
    %31 = vector.extract_strided_slice %30 {offsets = [0, 127], sizes = [2, 1], strides = [1, 1]} : vector<2x128xf32> to vector<2x1xf32>
    %cst_20 = arith.constant dense<0.000000e+00> : vector<2xf32>
    %32 = vector.multi_reduction <add>, %30, %cst_20 [1] : vector<2x128xf32> to vector<2xf32>
    %33 = vector.shape_cast %32 : vector<2xf32> to vector<2x1xf32>
    %34 = arith.subf %33, %31 : vector<2x1xf32>
    %cst_21 = arith.constant 0.142857149 : f32
    %35 = vector.broadcast %cst_21 : f32 to vector<2x1xf32>
    %36 = arith.mulf %34, %35 : vector<2x1xf32>
    %37 = arith.subf %31, %36 : vector<2x1xf32>
    %38 = vector.broadcast %37 : vector<2x1xf32> to vector<2x128xf32>
    %39 = arith.addf %30, %38 : vector<2x128xf32>
    %40 = arith.truncf %39 : vector<2x128xf32> to vector<2x128xbf16>
    %c0_22 = arith.constant 0 : index
    %c0_23 = arith.constant 0 : index
    %41 = vector.load %arg7[%c0_22, %c0_23] : memref<2x128xbf16, #tpu.memory_space<vmem>>, vector<2x128xbf16>
    tpu.vector_store %arg7[%c0_22, %c0_23], %40 {strides = array<i32>} : memref<2x128xbf16, #tpu.memory_space<vmem>>, vector<2x128xbf16>,
    return
  }
  func.func @transform_0(%arg0: i32) -> (i32, i32) {
    %c0_i32 = arith.constant 0 : i32
    %c0_i32_0 = arith.constant 0 : i32
    return %arg0, %c0_i32 : i32, i32
  }
  func.func @transform_1(%arg0: i32) -> (i32, i32) {
    %c0_i32 = arith.constant 0 : i32
    %c0_i32_0 = arith.constant 0 : i32
    %c0_i32_1 = arith.constant 0 : i32
    return %c0_i32, %c0_i32_0 : i32, i32
  }
  func.func @transform_2(%arg0: i32) -> (i32, i32) {
    %c0_i32 = arith.constant 0 : i32
    %c0_i32_0 = arith.constant 0 : i32
    %c0_i32_1 = arith.constant 0 : i32
    return %c0_i32, %c0_i32_0 : i32, i32
  }
  func.func @transform_3(%arg0: i32) -> (i32, i32) {
    %c0_i32 = arith.constant 0 : i32
    %c0_i32_0 = arith.constant 0 : i32
    %c0_i32_1 = arith.constant 0 : i32
    return %c0_i32, %c0_i32_0 : i32, i32
  }
  func.func @transform_4(%arg0: i32) -> (i32, i32) {
    %c0_i32 = arith.constant 0 : i32
    %c0_i32_0 = arith.constant 0 : i32
    %c0_i32_1 = arith.constant 0 : i32
    return %c0_i32, %c0_i32_0 : i32, i32
  }
  func.func @transform_5(%arg0: i32) -> (i32, i32) {
    %c0_i32 = arith.constant 0 : i32
    %c0_i32_0 = arith.constant 0 : i32
    %c0_i32_1 = arith.constant 0 : i32
    return %c0_i32, %c0_i32_0 : i32, i32
  }
  func.func @transform_6(%arg0: i32) -> (i32, i32) {
    %c0_i32 = arith.constant 0 : i32
    %c0_i32_0 = arith.constant 0 : i32
    return %arg0, %c0_i32 : i32, i32
  }
}

</mosaic_0001>

<llo_original>
// kernel: tpu_custom_call.1
$region0: #{tpu_custom_call.1}
  #allocation0 [shape = 'u32[]', space=smem, size = 0x4, offset = 0x4, fixed_abs, tag = 'smem constant byte address 0x4 - core index']
  #allocation1 [shape = 'u32[144,128]{1,0:T(1,128)}', space=vmem, size = 0x12000, scoped, tag = 'internal scratch']
  %s0 = inlined_call_operand.hbm [shape: f32[2,200], index: 0, kind: input, shape index: {}]
  %s1 = inlined_call_operand.hbm [shape: bf16[200,512], index: 1, kind: input, shape index: {}]
  %s2 = inlined_call_operand.hbm [shape: bf16[512,256], index: 2, kind: input, shape index: {}]
  %s3 = inlined_call_operand.hbm [shape: bf16[256,256], index: 3, kind: input, shape index: {}]
  %s4 = inlined_call_operand.hbm [shape: bf16[256,128], index: 4, kind: input, shape index: {}]
  %s5 = inlined_call_operand.vmem [shape: f32[1,1152], index: 5, kind: input, shape index: {}]
  %s6 = inlined_call_operand.hbm [shape: bf16[2,128], index: 6, kind: output, shape index: {}]
  %s7 = sld [smem:[#allocation0]]
  $region54: #{tpu_custom_call.1} parent=0
    _
  %s9 = ssub.s32 1, %s7
  %s10 = scalar_select 0, %s9, %s7
  $region1: #{tpu_custom_call.1} parent=0
    #allocation2 [shape = 'u8[2048]{0}', space=vmem, size = 0x800, scoped, tag = 'input window, operand 0, single buffered']
    #allocation3 [shape = 's32[1]{0}', space=sflag, size = 0x4, scoped, tag = 'scoped memory for tpu_custom_call.1']
    #allocation4 [shape = 's32[1]{0}', space=sflag, size = 0x4, scoped, tag = 'scoped memory for tpu_custom_call.1']
    #allocation5 [shape = 'u8[204800]{0}', space=vmem, size = 0x32000, scoped, tag = 'input window, operand 1, single buffered']
    #allocation6 [shape = 's32[1]{0}', space=sflag, size = 0x4, scoped, tag = 'scoped memory for tpu_custom_call.1']
    #allocation7 [shape = 'u8[262144]{0}', space=vmem, size = 0x40000, scoped, tag = 'input window, operand 2, single buffered']
    #allocation8 [shape = 'u8[131072]{0}', space=vmem, size = 0x20000, scoped, tag = 'input window, operand 3, single buffered']
    #allocation9 [shape = 's32[1]{0}', space=sflag, size = 0x4, scoped, tag = 'scoped memory for tpu_custom_call.1']
    #allocation10 [shape = 'u8[65536]{0}', space=vmem, size = 0x10000, scoped, tag = 'input window, operand 4, single buffered']
    #allocation11 [shape = 'u8[512]{0}', space=vmem, size = 0x400, scoped, tag = 'output window, operand 0, single buffered']
    %11 = vsyncpa [#allocation3], 0
    %12 = vsyncpa [#allocation6], 0
    %13 = vsyncpa [#allocation9], 0
    %14 = vsyncpa [#allocation4], 0
    // Predicated region
    $region2: #{tpu_custom_call.1} parent=1 // pred_check
      _
    $region3: #{tpu_custom_call.1} parent=1 // pred_check_branch
      %16 = sbr.rel (0) target = $region5
    $region4: #{tpu_custom_call.1} parent=1 // pred_region
      %s18 = ssub.s32 64, 64
      %19 = vsyncadd [#allocation3], %s18
      %s21 = sshll.u32 [#allocation2], 4
      %s22 = int_to_ptr.vmem [resolvable:$true] %s21
      %24 = dma.hbm_to_vmem [thread:$0]  %s0, 64, %s22, [#allocation3]
    $region5: #{tpu_custom_call.1} parent=1 // pred_fallthru
      _
    // Predicated region
    $region6: #{tpu_custom_call.1} parent=1 // pred_check
      _
    $region7: #{tpu_custom_call.1} parent=1 // pred_check_branch
      %26 = sbr.rel (0) target = $region9
    $region8: #{tpu_custom_call.1} parent=1 // pred_region
      %s28 = ssub.s32 6400, 6400
      %29 = vsyncadd [#allocation6], %s28
      %s30 = sshll.u32 [#allocation5], 4
      %s31 = int_to_ptr.vmem [resolvable:$true] %s30
      %36 = dma.hbm_to_vmem [thread:$0]  %s1, 6400, %s31, [#allocation6], 256, 256, 16
    $region9: #{tpu_custom_call.1} parent=1 // pred_fallthru
      _
    // Predicated region
    $region10: #{tpu_custom_call.1} parent=1 // pred_check
      _
    $region11: #{tpu_custom_call.1} parent=1 // pred_check_branch
      %38 = sbr.rel (0) target = $region13
    $region12: #{tpu_custom_call.1} parent=1 // pred_region
      %s40 = ssub.s32 8192, 8192
      %41 = vsyncadd [#allocation6], %s40
      %s42 = sshll.u32 [#allocation7], 4
      %s43 = int_to_ptr.vmem [resolvable:$true] %s42
      %48 = dma.hbm_to_vmem [thread:$0]  %s2, 8192, %s43, [#allocation6], 128, 128, 8
    $region13: #{tpu_custom_call.1} parent=1 // pred_fallthru
      _
    // Predicated region
    $region14: #{tpu_custom_call.1} parent=1 // pred_check
      _
    $region15: #{tpu_custom_call.1} parent=1 // pred_check_branch
      %50 = sbr.rel (0) target = $region17
    $region16: #{tpu_custom_call.1} parent=1 // pred_region
      %s52 = ssub.s32 4096, 4096
      %53 = vsyncadd [#allocation9], %s52
      %s54 = sshll.u32 [#allocation8], 4
      %s55 = int_to_ptr.vmem [resolvable:$true] %s54
      %60 = dma.hbm_to_vmem [thread:$0]  %s3, 4096, %s55, [#allocation9], 128, 128, 8
    $region17: #{tpu_custom_call.1} parent=1 // pred_fallthru
      _
    // Predicated region
    $region18: #{tpu_custom_call.1} parent=1 // pred_check
      _
    $region19: #{tpu_custom_call.1} parent=1 // pred_check_branch
      %62 = sbr.rel (0) target = $region21
    $region20: #{tpu_custom_call.1} parent=1 // pred_region
      %s64 = ssub.s32 2048, 2048
      %65 = vsyncadd [#allocation9], %s64
      %s66 = sshll.u32 [#allocation10], 4
      %s67 = int_to_ptr.vmem [resolvable:$true] %s66
      %72 = dma.hbm_to_vmem [thread:$0]  %s4, 2048, %s67, [#allocation9], 64, 64, 4
    $region21: #{tpu_custom_call.1} parent=1 // pred_fallthru
      _
    // Predicated region
    $region22: #{tpu_custom_call.1} parent=1 // pred_check
      _
    $region23: #{tpu_custom_call.1} parent=1 // pred_check_branch
      %74 = sbr.rel (0) target = $region25
    $region24: #{tpu_custom_call.1} parent=1 // pred_region
      _
    $region25: #{tpu_custom_call.1} parent=1 // pred_fallthru
      _
    // Predicated region
    $region26: #{tpu_custom_call.1} parent=1 // pred_check
      _
    $region27: #{tpu_custom_call.1} parent=1 // pred_check_branch
      %76 = sbr.rel (0) target = $region29
    $region28: #{tpu_custom_call.1} parent=1 // pred_region
      %77 = dma.done [#allocation3], 64
    $region29: #{tpu_custom_call.1} parent=1 // pred_fallthru
      _
    // Predicated region
    $region30: #{tpu_custom_call.1} parent=1 // pred_check
      _
    $region31: #{tpu_custom_call.1} parent=1 // pred_check_branch
      %79 = sbr.rel (0) target = $region33
    $region32: #{tpu_custom_call.1} parent=1 // pred_region
      %80 = dma.done [#allocation6], 6400
    $region33: #{tpu_custom_call.1} parent=1 // pred_fallthru
      _
    // Predicated region
    $region34: #{tpu_custom_call.1} parent=1 // pred_check
      _
    $region35: #{tpu_custom_call.1} parent=1 // pred_check_branch
      %82 = sbr.rel (0) target = $region37
    $region36: #{tpu_custom_call.1} parent=1 // pred_region
      %83 = dma.done [#allocation6], 8192
    $region37: #{tpu_custom_call.1} parent=1 // pred_fallthru
      _
    // Predicated region
    $region38: #{tpu_custom_call.1} parent=1 // pred_check
      _
    $region39: #{tpu_custom_call.1} parent=1 // pred_check_branch
      %85 = sbr.rel (0) target = $region41
    $region40: #{tpu_custom_call.1} parent=1 // pred_region
      %86 = dma.done [#allocation9], 4096
    $region41: #{tpu_custom_call.1} parent=1 // pred_fallthru
      _
    // Predicated region
    $region42: #{tpu_custom_call.1} parent=1 // pred_check
      _
    $region43: #{tpu_custom_call.1} parent=1 // pred_check_branch
      %88 = sbr.rel (0) target = $region45
    $region44: #{tpu_custom_call.1} parent=1 // pred_region
      %89 = dma.done [#allocation9], 2048
    $region45: #{tpu_custom_call.1} parent=1 // pred_fallthru
      _
    %v91 = vld [vmem:[%s5] sm:$0xf]
    %v92 = vld [vmem:[%s5 + $0x4] sm:$0x3]
    %v93 = vld [vmem:[%s5 + $0x6] sm:$0x3]
    %v94 = vld [vmem:[%s5 + $0x8] sm:$0x1]
    %v95 = vld [vmem:[#allocation2] sm:$0xf]
    %v98 = vunpack.c.l.s4 1983009808
    %v99 = vunpack.c.0.s8 %v98
    %v100 = vlaneseq
    %v101 = vshrl.u32 %v100, 7
    %v102 = vsub.s32 %v99, %v101
    %v103 = vrot.slane %v95, %v102
    %v104 = vcombine.high %v103, %v103
    %v107 = vpack.c.bf16 %v103, %v103
    %v108 = vpack.c.bf16 %v104, %v104
    %v109 = vld [vmem:[#allocation5] sm:$0xff]
    %v110 = vld [vmem:[#allocation5 + $0x8] sm:$0xff]
    %v111 = vld [vmem:[#allocation5 + $0x10] sm:$0xff]
    %v112 = vld [vmem:[#allocation5 + $0x18] sm:$0xff]
    %v113 = vld [vmem:[#allocation5 + $0x20] sm:$0xff]
    %v114 = vld [vmem:[#allocation5 + $0x28] sm:$0xff]
    %v115 = vld [vmem:[#allocation5 + $0x30] sm:$0xff]
    %v116 = vld [vmem:[#allocation5 + $0x38] sm:$0xff]
    %v117 = vld [vmem:[#allocation5 + $0x40] sm:$0xff]
    %v118 = vld [vmem:[#allocation5 + $0x48] sm:$0xff]
    %v119 = vld [vmem:[#allocation5 + $0x50] sm:$0xff]
    %v120 = vld [vmem:[#allocation5 + $0x58] sm:$0xff]
    %v121 = vld [vmem:[#allocation5 + $0x60] sm:$0xff]
    %v122 = vld [vmem:[#allocation5 + $0x68] sm:$0xff]
    %v123 = vld [vmem:[#allocation5 + $0x70] sm:$0xff]
    %v124 = vld [vmem:[#allocation5 + $0x78] sm:$0xff]
    %v125 = vld [vmem:[#allocation5 + $0x80] sm:$0xff]
    %v126 = vld [vmem:[#allocation5 + $0x88] sm:$0xff]
    %v127 = vld [vmem:[#allocation5 + $0x90] sm:$0xff]
    %v128 = vld [vmem:[#allocation5 + $0x98] sm:$0xff]
    %v129 = vld [vmem:[#allocation5 + $0xa0] sm:$0xff]
    %v130 = vld [vmem:[#allocation5 + $0xa8] sm:$0xff]
    %v131 = vld [vmem:[#allocation5 + $0xb0] sm:$0xff]
    %v132 = vld [vmem:[#allocation5 + $0xb8] sm:$0xff]
    %v133 = vld [vmem:[#allocation5 + $0xc0] sm:$0xff]
    %v134 = vld [vmem:[#allocation5 + $0xc8] sm:$0xff]
    %v135 = vld [vmem:[#allocation5 + $0xd0] sm:$0xff]
    %v136 = vld [vmem:[#allocation5 + $0xd8] sm:$0xff]
    %v137 = vld [vmem:[#allocation5 + $0xe0] sm:$0xff]
    %v138 = vld [vmem:[#allocation5 + $0xe8] sm:$0xff]
    %v139 = vld [vmem:[#allocation5 + $0xf0] sm:$0xff]
    %v140 = vld [vmem:[#allocation5 + $0xf8] sm:$0xff]
    %v141 = vld [vmem:[#allocation5 + $0x100] sm:$0xff]
    %v142 = vld [vmem:[#allocation5 + $0x108] sm:$0xff]
    %v143 = vld [vmem:[#allocation5 + $0x110] sm:$0xff]
    %v144 = vld [vmem:[#allocation5 + $0x118] sm:$0xff]
    %v145 = vld [vmem:[#allocation5 + $0x120] sm:$0xff]
    %v146 = vld [vmem:[#allocation5 + $0x128] sm:$0xff]
    %v147 = vld [vmem:[#allocation5 + $0x130] sm:$0xff]
    %v148 = vld [vmem:[#allocation5 + $0x138] sm:$0xff]
    %v149 = vld [vmem:[#allocation5 + $0x140] sm:$0xff]
    %v150 = vld [vmem:[#allocation5 + $0x148] sm:$0xff]
    %v151 = vld [vmem:[#allocation5 + $0x150] sm:$0xff]
    %v152 = vld [vmem:[#allocation5 + $0x158] sm:$0xff]
    %v153 = vld [vmem:[#allocation5 + $0x160] sm:$0xff]
    %v154 = vld [vmem:[#allocation5 + $0x168] sm:$0xff]
    %v155 = vld [vmem:[#allocation5 + $0x170] sm:$0xff]
    %v156 = vld [vmem:[#allocation5 + $0x178] sm:$0xff]
    %v157 = vld [vmem:[#allocation5 + $0x180] sm:$0xff]
    %v158 = vld [vmem:[#allocation5 + $0x188] sm:$0xff]
    %v160 = vlaneseq
    %v161 = vshrl.u32 %v160, 7
    %v162 = vsub.s32 0, %v161
    %v163 = vrot.slane %v91, %v162
    %v164 = vlaneseq
    %v165 = vshrl.u32 %v164, 7
    %v166 = vsub.s32 1, %v165
    %v167 = vrot.slane %v91, %v166
    %v168 = vlaneseq
    %v169 = vshrl.u32 %v168, 7
    %v170 = vsub.s32 2, %v169
    %v171 = vrot.slane %v91, %v170
    %v172 = vlaneseq
    %v173 = vshrl.u32 %v172, 7
    %v174 = vsub.s32 3, %v173
    %v175 = vrot.slane %v91, %v174
    %v230 = vunpack.c.l.b16 %v109
    %v231 = vunpack.c.h.b16 %v109
    %v232 = vunpack.c.l.b16 %v110
    %v233 = vunpack.c.h.b16 %v110
    %v234 = vunpack.c.l.b16 %v111
    %v235 = vunpack.c.h.b16 %v111
    %v236 = vunpack.c.l.b16 %v112
    %v237 = vunpack.c.h.b16 %v112
    %v238 = vunpack.c.l.b16 %v113
    %v239 = vunpack.c.h.b16 %v113
    %v240 = vunpack.c.l.b16 %v114
    %v241 = vunpack.c.h.b16 %v114
    %v242 = vunpack.c.l.b16 %v115
    %v243 = vunpack.c.h.b16 %v115
    %v244 = vunpack.c.l.b16 %v116
    %v245 = vunpack.c.h.b16 %v116
    %v246 = vunpack.c.l.b16 %v117
    %v247 = vunpack.c.h.b16 %v117
    %v248 = vunpack.c.l.b16 %v118
    %v249 = vunpack.c.h.b16 %v118
    %v250 = vunpack.c.l.b16 %v119
    %v251 = vunpack.c.h.b16 %v119
    %v252 = vunpack.c.l.b16 %v120
    %v253 = vunpack.c.h.b16 %v120
    %v254 = vunpack.c.l.b16 %v121
    %v255 = vunpack.c.h.b16 %v121
    %v256 = vunpack.c.l.b16 %v122
    %v257 = vunpack.c.h.b16 %v122
    %v258 = vunpack.c.l.b16 %v123
    %v259 = vunpack.c.h.b16 %v123
    %v260 = vunpack.c.l.b16 %v124
    %v261 = vunpack.c.h.b16 %v124
    %v262 = vunpack.c.l.b16 %v125
    %v263 = vunpack.c.h.b16 %v125
    %v264 = vunpack.c.l.b16 %v126
    %v265 = vunpack.c.h.b16 %v126
    %v266 = vunpack.c.l.b16 %v127
    %v267 = vunpack.c.h.b16 %v127
    %v268 = vunpack.c.l.b16 %v128
    %v269 = vunpack.c.h.b16 %v128
    %v270 = vunpack.c.l.b16 %v129
    %v271 = vunpack.c.h.b16 %v129
    %v272 = vunpack.c.l.b16 %v130
    %v273 = vunpack.c.h.b16 %v130
    %v274 = vunpack.c.l.b16 %v131
    %v275 = vunpack.c.h.b16 %v131
    %v276 = vunpack.c.l.b16 %v132
    %v277 = vunpack.c.h.b16 %v132
    %v278 = vunpack.c.l.b16 %v133
    %v279 = vunpack.c.h.b16 %v133
    %v280 = vunpack.c.l.b16 %v134
    %v281 = vunpack.c.h.b16 %v134
    %v282 = vunpack.c.l.b16 %v135
    %v283 = vunpack.c.h.b16 %v135
    %v284 = vunpack.c.l.b16 %v136
    %v285 = vunpack.c.h.b16 %v136
    %v286 = vunpack.c.l.b16 %v137
    %v287 = vunpack.c.h.b16 %v137
    %v288 = vunpack.c.l.b16 %v138
    %v289 = vunpack.c.h.b16 %v138
    %v290 = vunpack.c.l.b16 %v139
    %v291 = vunpack.c.h.b16 %v139
    %v292 = vunpack.c.l.b16 %v140
    %v293 = vunpack.c.h.b16 %v140
    %v294 = vunpack.c.l.b16 %v141
    %v295 = vunpack.c.h.b16 %v141
    %v296 = vunpack.c.l.b16 %v142
    %v297 = vunpack.c.h.b16 %v142
    %v298 = vunpack.c.l.b16 %v143
    %v299 = vunpack.c.h.b16 %v143
    %v300 = vunpack.c.l.b16 %v144
    %v301 = vunpack.c.h.b16 %v144
    %v302 = vunpack.c.l.b16 %v145
    %v303 = vunpack.c.h.b16 %v145
    %v304 = vunpack.c.l.b16 %v146
    %v305 = vunpack.c.h.b16 %v146
    %v306 = vunpack.c.l.b16 %v147
    %v307 = vunpack.c.h.b16 %v147
    %v308 = vunpack.c.l.b16 %v148
    %v309 = vunpack.c.h.b16 %v148
    %v310 = vunpack.c.l.b16 %v149
    %v311 = vunpack.c.h.b16 %v149
    %v312 = vunpack.c.l.b16 %v150
    %v313 = vunpack.c.h.b16 %v150
    %v314 = vunpack.c.l.b16 %v151
    %v315 = vunpack.c.h.b16 %v151
    %v316 = vunpack.c.l.b16 %v152
    %v317 = vunpack.c.h.b16 %v152
    %v318 = vunpack.c.l.b16 %v153
    %v319 = vunpack.c.h.b16 %v153
    %v320 = vunpack.c.l.b16 %v154
    %v321 = vunpack.c.h.b16 %v154
    %v322 = vunpack.c.l.b16 %v155
    %v323 = vunpack.c.h.b16 %v155
    %v324 = vunpack.c.l.b16 %v156
    %v325 = vunpack.c.h.b16 %v156
    %v326 = vunpack.c.l.b16 %v157
    %v327 = vunpack.c.h.b16 %v157
    %v328 = vunpack.c.l.b16 %v158
    %v329 = vunpack.c.h.b16 %v158
    %v330 = vpack.c.b16 %v234, %v230
    %v331 = vpack.c.b16 %v235, %v231
    %v332 = vpack.c.b16 %v236, %v232
    %v333 = vpack.c.b16 %v237, %v233
    %v334 = vpack.c.b16 %v242, %v238
    %v335 = vpack.c.b16 %v243, %v239
    %v336 = vpack.c.b16 %v244, %v240
    %v337 = vpack.c.b16 %v245, %v241
    %v338 = vpack.c.b16 %v250, %v246
    %v339 = vpack.c.b16 %v251, %v247
    %v340 = vpack.c.b16 %v252, %v248
    %v341 = vpack.c.b16 %v253, %v249
    %v342 = vpack.c.b16 %v258, %v254
    %v343 = vpack.c.b16 %v259, %v255
    %v344 = vpack.c.b16 %v260, %v256
    %v345 = vpack.c.b16 %v261, %v257
    %v346 = vpack.c.b16 %v266, %v262
    %v347 = vpack.c.b16 %v267, %v263
    %v348 = vpack.c.b16 %v268, %v264
    %v349 = vpack.c.b16 %v269, %v265
    %v350 = vpack.c.b16 %v274, %v270
    %v351 = vpack.c.b16 %v275, %v271
    %v352 = vpack.c.b16 %v276, %v272
    %v353 = vpack.c.b16 %v277, %v273
    %v354 = vpack.c.b16 %v282, %v278
    %v355 = vpack.c.b16 %v283, %v279
    %v356 = vpack.c.b16 %v284, %v280
    %v357 = vpack.c.b16 %v285, %v281
    %v358 = vpack.c.b16 %v290, %v286
    %v359 = vpack.c.b16 %v291, %v287
    %v360 = vpack.c.b16 %v292, %v288
    %v361 = vpack.c.b16 %v293, %v289
    %v362 = vpack.c.b16 %v298, %v294
    %v363 = vpack.c.b16 %v299, %v295
    %v364 = vpack.c.b16 %v300, %v296
    %v365 = vpack.c.b16 %v301, %v297
    %v366 = vpack.c.b16 %v306, %v302
    %v367 = vpack.c.b16 %v307, %v303
    %v368 = vpack.c.b16 %v308, %v304
    %v369 = vpack.c.b16 %v309, %v305
    %v370 = vpack.c.b16 %v314, %v310
    %v371 = vpack.c.b16 %v315, %v311
    %v372 = vpack.c.b16 %v316, %v312
    %v373 = vpack.c.b16 %v317, %v313
    %v374 = vpack.c.b16 %v322, %v318
    %v375 = vpack.c.b16 %v323, %v319
    %v376 = vpack.c.b16 %v324, %v320
    %v377 = vpack.c.b16 %v325, %v321
    %v378 = vpack.c.b16 %v326, %v326
    %v379 = vpack.c.b16 %v327, %v327
    %v380 = vpack.c.b16 %v328, %v328
    %v381 = vpack.c.b16 %v329, %v329
    %vm430 = vcmask 588800
    %v432 = vsel %vm430, %v108, 0
    %vm434 = vcmask 1043456
    %v436 = vsel %vm434, %v378, 0
    %v439 = vsel %vm434, %v379, 0
    %v442 = vsel %vm434, %v380, 0
    %v445 = vsel %vm434, %v381, 0
    %447 = vmatprep.subr.bf16.mxu0 %v359
    %448 = vmatpush1.bf16.msra.mxu0 %v358
    %449 = vmatprep.subr.bf16.mxu0 %v355
    %450 = vmatpush1.bf16.msra.mxu0 %v354
    %451 = vmatprep.subr.bf16.mxu0 %v351
    %452 = vmatpush1.bf16.msra.mxu0 %v350
    %453 = vmatprep.subr.bf16.mxu0 %v347
    %454 = vmatpush1.bf16.msra.mxu0 %v346
    %455 = vmatprep.subr.bf16.mxu0 %v343
    %456 = vmatpush1.bf16.msra.mxu0 %v342
    %457 = vmatprep.subr.bf16.mxu0 %v339
    %458 = vmatpush1.bf16.msra.mxu0 %v338
    %459 = vmatprep.subr.bf16.mxu0 %v335
    %460 = vmatpush1.bf16.msra.mxu0 %v334
    %461 = vmatprep.subr.bf16.mxu0 %v331
    %462 = vmatpush1.bf16.msra.mxu0 %v330
    %463 = vmatprep.subr.bf16.mxu0 0
    %464 = vmatpush2.bf16.msra.mxu0 0
    %465 = vmatprep.subr.bf16.mxu0 0
    %466 = vmatpush2.bf16.msra.mxu0 0
    %467 = vmatprep.subr.bf16.mxu0 0
    %468 = vmatpush2.bf16.msra.mxu0 0
    %469 = vmatprep.subr.bf16.mxu0 %v439
    %470 = vmatpush2.bf16.msra.mxu0 %v436
    %471 = vmatprep.subr.bf16.mxu0 %v375
    %472 = vmatpush2.bf16.msra.mxu0 %v374
    %473 = vmatprep.subr.bf16.mxu0 %v371
    %474 = vmatpush2.bf16.msra.mxu0 %v370
    %475 = vmatprep.subr.bf16.mxu0 %v367
    %476 = vmatpush2.bf16.msra.mxu0 %v366
    %477 = vmatprep.subr.bf16.mxu0 %v363
    %478 = vmatpush2.bf16.msra.mxu0 %v362
    %479 = vmatprep.mubr.bf16.mxu0 %v432
    %480 = vmatmul.mubr.bf16.gmra.mxu0 %v107
    %v481 = vpop.f32.mrf.mxu0
    %v482 = vadd.f32 %v163, %v481
    %v483 = vpop.f32.mrf.mxu0
    %v484 = vadd.f32 %v167, %v483
    %v485 = vpop.f32.mrf.mxu0
    %v486 = vpop.f32.mrf.mxu0
    %487 = vdwg.mxu0
    %488 = vmatprep.subr.bf16.mxu0 %v361
    %489 = vmatpush1.bf16.msra.mxu0 %v360
    %490 = vmatprep.subr.bf16.mxu0 %v357
    %491 = vmatpush1.bf16.msra.mxu0 %v356
    %492 = vmatprep.subr.bf16.mxu0 %v353
    %493 = vmatpush1.bf16.msra.mxu0 %v352
    %494 = vmatprep.subr.bf16.mxu0 %v349
    %495 = vmatpush1.bf16.msra.mxu0 %v348
    %496 = vmatprep.subr.bf16.mxu0 %v345
    %497 = vmatpush1.bf16.msra.mxu0 %v344
    %498 = vmatprep.subr.bf16.mxu0 %v341
    %499 = vmatpush1.bf16.msra.mxu0 %v340
    %500 = vmatprep.subr.bf16.mxu0 %v337
    %501 = vmatpush1.bf16.msra.mxu0 %v336
    %502 = vmatprep.subr.bf16.mxu0 %v333
    %503 = vmatpush1.bf16.msra.mxu0 %v332
    %504 = vmatprep.subr.bf16.mxu0 0
    %505 = vmatpush2.bf16.msra.mxu0 0
    %506 = vmatprep.subr.bf16.mxu0 0
    %507 = vmatpush2.bf16.msra.mxu0 0
    %508 = vmatprep.subr.bf16.mxu0 0
    %509 = vmatpush2.bf16.msra.mxu0 0
    %510 = vmatprep.subr.bf16.mxu0 %v445
    %511 = vmatpush2.bf16.msra.mxu0 %v442
    %512 = vmatprep.subr.bf16.mxu0 %v377
    %513 = vmatpush2.bf16.msra.mxu0 %v376
    %514 = vmatprep.subr.bf16.mxu0 %v373
    %515 = vmatpush2.bf16.msra.mxu0 %v372
    %516 = vmatprep.subr.bf16.mxu0 %v369
    %517 = vmatpush2.bf16.msra.mxu0 %v368
    %518 = vmatprep.subr.bf16.mxu0 %v365
    %519 = vmatpush2.bf16.msra.mxu0 %v364
    %520 = vmatprep.mubr.bf16.mxu0 %v432
    %521 = vmatmul.mubr.bf16.gmra.mxu0 %v107
    %v522 = vpop.f32.mrf.mxu0
    %v523 = vadd.f32 %v171, %v522
    %v524 = vpop.f32.mrf.mxu0
    %v525 = vadd.f32 %v175, %v524
    %v526 = vpop.f32.mrf.mxu0
    %v527 = vpop.f32.mrf.mxu0
    %528 = vdwg.mxu0
    %v529 = vmax.f32 %v482, 0.0
    %v530 = vmax.f32 %v484, 0.0
    %v531 = vmax.f32 %v523, 0.0
    %v532 = vmax.f32 %v525, 0.0
    %v533 = vpack.c.bf16 %v529, %v529
    %v534 = vpack.c.bf16 %v530, %v530
    %v535 = vpack.c.bf16 %v531, %v531
    %v536 = vpack.c.bf16 %v532, %v532
    %v537 = vld [vmem:[#allocation7] sm:$0xff]
    %v538 = vld [vmem:[#allocation7 + $0x8] sm:$0xff]
    %v539 = vld [vmem:[#allocation7 + $0x10] sm:$0xff]
    %v540 = vld [vmem:[#allocation7 + $0x18] sm:$0xff]
    %v541 = vld [vmem:[#allocation7 + $0x20] sm:$0xff]
    %v542 = vld [vmem:[#allocation7 + $0x28] sm:$0xff]
    %v543 = vld [vmem:[#allocation7 + $0x30] sm:$0xff]
    %v544 = vld [vmem:[#allocation7 + $0x38] sm:$0xff]
    %v545 = vld [vmem:[#allocation7 + $0x40] sm:$0xff]
    %v546 = vld [vmem:[#allocation7 + $0x48] sm:$0xff]
    %v547 = vld [vmem:[#allocation7 + $0x50] sm:$0xff]
    %v548 = vld [vmem:[#allocation7 + $0x58] sm:$0xff]
    %v549 = vld [vmem:[#allocation7 + $0x60] sm:$0xff]
    %v550 = vld [vmem:[#allocation7 + $0x68] sm:$0xff]
    %v551 = vld [vmem:[#allocation7 + $0x70] sm:$0xff]
    %v552 = vld [vmem:[#allocation7 + $0x78] sm:$0xff]
    %v553 = vld [vmem:[#allocation7 + $0x80] sm:$0xff]
    %v554 = vld [vmem:[#allocation7 + $0x88] sm:$0xff]
    %v555 = vld [vmem:[#allocation7 + $0x90] sm:$0xff]
    %v556 = vld [vmem:[#allocation7 + $0x98] sm:$0xff]
    %v557 = vld [vmem:[#allocation7 + $0xa0] sm:$0xff]
    %v558 = vld [vmem:[#allocation7 + $0xa8] sm:$0xff]
    %v559 = vld [vmem:[#allocation7 + $0xb0] sm:$0xff]
    %v560 = vld [vmem:[#allocation7 + $0xb8] sm:$0xff]
    %v561 = vld [vmem:[#allocation7 + $0xc0] sm:$0xff]
    %v562 = vld [vmem:[#allocation7 + $0xc8] sm:$0xff]
    %v563 = vld [vmem:[#allocation7 + $0xd0] sm:$0xff]
    %v564 = vld [vmem:[#allocation7 + $0xd8] sm:$0xff]
    %v565 = vld [vmem:[#allocation7 + $0xe0] sm:$0xff]
    %v566 = vld [vmem:[#allocation7 + $0xe8] sm:$0xff]
    %v567 = vld [vmem:[#allocation7 + $0xf0] sm:$0xff]
    %v568 = vld [vmem:[#allocation7 + $0xf8] sm:$0xff]
    %v569 = vld [vmem:[#allocation7 + $0x100] sm:$0xff]
    %v570 = vld [vmem:[#allocation7 + $0x108] sm:$0xff]
    %v571 = vld [vmem:[#allocation7 + $0x110] sm:$0xff]
    %v572 = vld [vmem:[#allocation7 + $0x118] sm:$0xff]
    %v573 = vld [vmem:[#allocation7 + $0x120] sm:$0xff]
    %v574 = vld [vmem:[#allocation7 + $0x128] sm:$0xff]
    %v575 = vld [vmem:[#allocation7 + $0x130] sm:$0xff]
    %v576 = vld [vmem:[#allocation7 + $0x138] sm:$0xff]
    %v577 = vld [vmem:[#allocation7 + $0x140] sm:$0xff]
    %v578 = vld [vmem:[#allocation7 + $0x148] sm:$0xff]
    %v579 = vld [vmem:[#allocation7 + $0x150] sm:$0xff]
    %v580 = vld [vmem:[#allocation7 + $0x158] sm:$0xff]
    %v581 = vld [vmem:[#allocation7 + $0x160] sm:$0xff]
    %v582 = vld [vmem:[#allocation7 + $0x168] sm:$0xff]
    %v583 = vld [vmem:[#allocation7 + $0x170] sm:$0xff]
    %v584 = vld [vmem:[#allocation7 + $0x178] sm:$0xff]
    %v585 = vld [vmem:[#allocation7 + $0x180] sm:$0xff]
    %v586 = vld [vmem:[#allocation7 + $0x188] sm:$0xff]
    %v587 = vld [vmem:[#allocation7 + $0x190] sm:$0xff]
    %v588 = vld [vmem:[#allocation7 + $0x198] sm:$0xff]
    %v589 = vld [vmem:[#allocation7 + $0x1a0] sm:$0xff]
    %v590 = vld [vmem:[#allocation7 + $0x1a8] sm:$0xff]
    %v591 = vld [vmem:[#allocation7 + $0x1b0] sm:$0xff]
    %v592 = vld [vmem:[#allocation7 + $0x1b8] sm:$0xff]
    %v593 = vld [vmem:[#allocation7 + $0x1c0] sm:$0xff]
    %v594 = vld [vmem:[#allocation7 + $0x1c8] sm:$0xff]
    %v595 = vld [vmem:[#allocation7 + $0x1d0] sm:$0xff]
    %v596 = vld [vmem:[#allocation7 + $0x1d8] sm:$0xff]
    %v597 = vld [vmem:[#allocation7 + $0x1e0] sm:$0xff]
    %v598 = vld [vmem:[#allocation7 + $0x1e8] sm:$0xff]
    %v599 = vld [vmem:[#allocation7 + $0x1f0] sm:$0xff]
    %v600 = vld [vmem:[#allocation7 + $0x1f8] sm:$0xff]
    %v602 = vlaneseq
    %v603 = vshrl.u32 %v602, 7
    %v604 = vsub.s32 0, %v603
    %v605 = vrot.slane %v92, %v604
    %v606 = vlaneseq
    %v607 = vshrl.u32 %v606, 7
    %v608 = vsub.s32 1, %v607
    %v609 = vrot.slane %v92, %v608
    %v676 = vunpack.c.l.b16 %v537
    %v677 = vunpack.c.h.b16 %v537
    %v678 = vunpack.c.l.b16 %v538
    %v679 = vunpack.c.h.b16 %v538
    %v680 = vunpack.c.l.b16 %v539
    %v681 = vunpack.c.h.b16 %v539
    %v682 = vunpack.c.l.b16 %v540
    %v683 = vunpack.c.h.b16 %v540
    %v684 = vunpack.c.l.b16 %v541
    %v685 = vunpack.c.h.b16 %v541
    %v686 = vunpack.c.l.b16 %v542
    %v687 = vunpack.c.h.b16 %v542
    %v688 = vunpack.c.l.b16 %v543
    %v689 = vunpack.c.h.b16 %v543
    %v690 = vunpack.c.l.b16 %v544
    %v691 = vunpack.c.h.b16 %v544
    %v692 = vunpack.c.l.b16 %v545
    %v693 = vunpack.c.h.b16 %v545
    %v694 = vunpack.c.l.b16 %v546
    %v695 = vunpack.c.h.b16 %v546
    %v696 = vunpack.c.l.b16 %v547
    %v697 = vunpack.c.h.b16 %v547
    %v698 = vunpack.c.l.b16 %v548
    %v699 = vunpack.c.h.b16 %v548
    %v700 = vunpack.c.l.b16 %v549
    %v701 = vunpack.c.h.b16 %v549
    %v702 = vunpack.c.l.b16 %v550
    %v703 = vunpack.c.h.b16 %v550
    %v704 = vunpack.c.l.b16 %v551
    %v705 = vunpack.c.h.b16 %v551
    %v706 = vunpack.c.l.b16 %v552
    %v707 = vunpack.c.h.b16 %v552
    %v708 = vunpack.c.l.b16 %v553
    %v709 = vunpack.c.h.b16 %v553
    %v710 = vunpack.c.l.b16 %v554
    %v711 = vunpack.c.h.b16 %v554
    %v712 = vunpack.c.l.b16 %v555
    %v713 = vunpack.c.h.b16 %v555
    %v714 = vunpack.c.l.b16 %v556
    %v715 = vunpack.c.h.b16 %v556
    %v716 = vunpack.c.l.b16 %v557
    %v717 = vunpack.c.h.b16 %v557
    %v718 = vunpack.c.l.b16 %v558
    %v719 = vunpack.c.h.b16 %v558
    %v720 = vunpack.c.l.b16 %v559
    %v721 = vunpack.c.h.b16 %v559
    %v722 = vunpack.c.l.b16 %v560
    %v723 = vunpack.c.h.b16 %v560
    %v724 = vunpack.c.l.b16 %v561
    %v725 = vunpack.c.h.b16 %v561
    %v726 = vunpack.c.l.b16 %v562
    %v727 = vunpack.c.h.b16 %v562
    %v728 = vunpack.c.l.b16 %v563
    %v729 = vunpack.c.h.b16 %v563
    %v730 = vunpack.c.l.b16 %v564
    %v731 = vunpack.c.h.b16 %v564
    %v732 = vunpack.c.l.b16 %v565
    %v733 = vunpack.c.h.b16 %v565
    %v734 = vunpack.c.l.b16 %v566
    %v735 = vunpack.c.h.b16 %v566
    %v736 = vunpack.c.l.b16 %v567
    %v737 = vunpack.c.h.b16 %v567
    %v738 = vunpack.c.l.b16 %v568
    %v739 = vunpack.c.h.b16 %v568
    %v740 = vunpack.c.l.b16 %v569
    %v741 = vunpack.c.h.b16 %v569
    %v742 = vunpack.c.l.b16 %v570
    %v743 = vunpack.c.h.b16 %v570
    %v744 = vunpack.c.l.b16 %v571
    %v745 = vunpack.c.h.b16 %v571
    %v746 = vunpack.c.l.b16 %v572
    %v747 = vunpack.c.h.b16 %v572
    %v748 = vunpack.c.l.b16 %v573
    %v749 = vunpack.c.h.b16 %v573
    %v750 = vunpack.c.l.b16 %v574
    %v751 = vunpack.c.h.b16 %v574
    %v752 = vunpack.c.l.b16 %v575
    %v753 = vunpack.c.h.b16 %v575
    %v754 = vunpack.c.l.b16 %v576
    %v755 = vunpack.c.h.b16 %v576
    %v756 = vunpack.c.l.b16 %v577
    %v757 = vunpack.c.h.b16 %v577
    %v758 = vunpack.c.l.b16 %v578
    %v759 = vunpack.c.h.b16 %v578
    %v760 = vunpack.c.l.b16 %v579
    %v761 = vunpack.c.h.b16 %v579
    %v762 = vunpack.c.l.b16 %v580
    %v763 = vunpack.c.h.b16 %v580
    %v764 = vunpack.c.l.b16 %v581
    %v765 = vunpack.c.h.b16 %v581
    %v766 = vunpack.c.l.b16 %v582
    %v767 = vunpack.c.h.b16 %v582
    %v768 = vunpack.c.l.b16 %v583
    %v769 = vunpack.c.h.b16 %v583
    %v770 = vunpack.c.l.b16 %v584
    %v771 = vunpack.c.h.b16 %v584
    %v772 = vunpack.c.l.b16 %v585
    %v773 = vunpack.c.h.b16 %v585
    %v774 = vunpack.c.l.b16 %v586
    %v775 = vunpack.c.h.b16 %v586
    %v776 = vunpack.c.l.b16 %v587
    %v777 = vunpack.c.h.b16 %v587
    %v778 = vunpack.c.l.b16 %v588
    %v779 = vunpack.c.h.b16 %v588
    %v780 = vunpack.c.l.b16 %v589
    %v781 = vunpack.c.h.b16 %v589
    %v782 = vunpack.c.l.b16 %v590
    %v783 = vunpack.c.h.b16 %v590
    %v784 = vunpack.c.l.b16 %v591
    %v785 = vunpack.c.h.b16 %v591
    %v786 = vunpack.c.l.b16 %v592
    %v787 = vunpack.c.h.b16 %v592
    %v788 = vunpack.c.l.b16 %v593
    %v789 = vunpack.c.h.b16 %v593
    %v790 = vunpack.c.l.b16 %v594
    %v791 = vunpack.c.h.b16 %v594
    %v792 = vunpack.c.l.b16 %v595
    %v793 = vunpack.c.h.b16 %v595
    %v794 = vunpack.c.l.b16 %v596
    %v795 = vunpack.c.h.b16 %v596
    %v796 = vunpack.c.l.b16 %v597
    %v797 = vunpack.c.h.b16 %v597
    %v798 = vunpack.c.l.b16 %v598
    %v799 = vunpack.c.h.b16 %v598
    %v800 = vunpack.c.l.b16 %v599
    %v801 = vunpack.c.h.b16 %v599
    %v802 = vunpack.c.l.b16 %v600
    %v803 = vunpack.c.h.b16 %v600
    %v804 = vpack.c.b16 %v678, %v676
    %v805 = vpack.c.b16 %v679, %v677
    %v806 = vpack.c.b16 %v682, %v680
    %v807 = vpack.c.b16 %v683, %v681
    %v808 = vpack.c.b16 %v686, %v684
    %v809 = vpack.c.b16 %v687, %v685
    %v810 = vpack.c.b16 %v690, %v688
    %v811 = vpack.c.b16 %v691, %v689
    %v812 = vpack.c.b16 %v694, %v692
    %v813 = vpack.c.b16 %v695, %v693
    %v814 = vpack.c.b16 %v698, %v696
    %v815 = vpack.c.b16 %v699, %v697
    %v816 = vpack.c.b16 %v702, %v700
    %v817 = vpack.c.b16 %v703, %v701
    %v818 = vpack.c.b16 %v706, %v704
    %v819 = vpack.c.b16 %v707, %v705
    %v820 = vpack.c.b16 %v710, %v708
    %v821 = vpack.c.b16 %v711, %v709
    %v822 = vpack.c.b16 %v714, %v712
    %v823 = vpack.c.b16 %v715, %v713
    %v824 = vpack.c.b16 %v718, %v716
    %v825 = vpack.c.b16 %v719, %v717
    %v826 = vpack.c.b16 %v722, %v720
    %v827 = vpack.c.b16 %v723, %v721
    %v828 = vpack.c.b16 %v726, %v724
    %v829 = vpack.c.b16 %v727, %v725
    %v830 = vpack.c.b16 %v730, %v728
    %v831 = vpack.c.b16 %v731, %v729
    %v832 = vpack.c.b16 %v734, %v732
    %v833 = vpack.c.b16 %v735, %v733
    %v834 = vpack.c.b16 %v738, %v736
    %v835 = vpack.c.b16 %v739, %v737
    %v836 = vpack.c.b16 %v742, %v740
    %v837 = vpack.c.b16 %v743, %v741
    %v838 = vpack.c.b16 %v746, %v744
    %v839 = vpack.c.b16 %v747, %v745
    %v840 = vpack.c.b16 %v750, %v748
    %v841 = vpack.c.b16 %v751, %v749
    %v842 = vpack.c.b16 %v754, %v752
    %v843 = vpack.c.b16 %v755, %v753
    %v844 = vpack.c.b16 %v758, %v756
    %v845 = vpack.c.b16 %v759, %v757
    %v846 = vpack.c.b16 %v762, %v760
    %v847 = vpack.c.b16 %v763, %v761
    %v848 = vpack.c.b16 %v766, %v764
    %v849 = vpack.c.b16 %v767, %v765
    %v850 = vpack.c.b16 %v770, %v768
    %v851 = vpack.c.b16 %v771, %v769
    %v852 = vpack.c.b16 %v774, %v772
    %v853 = vpack.c.b16 %v775, %v773
    %v854 = vpack.c.b16 %v778, %v776
    %v855 = vpack.c.b16 %v779, %v777
    %v856 = vpack.c.b16 %v782, %v780
    %v857 = vpack.c.b16 %v783, %v781
    %v858 = vpack.c.b16 %v786, %v784
    %v859 = vpack.c.b16 %v787, %v785
    %v860 = vpack.c.b16 %v790, %v788
    %v861 = vpack.c.b16 %v791, %v789
    %v862 = vpack.c.b16 %v794, %v792
    %v863 = vpack.c.b16 %v795, %v793
    %v864 = vpack.c.b16 %v798, %v796
    %v865 = vpack.c.b16 %v799, %v797
    %v866 = vpack.c.b16 %v802, %v800
    %v867 = vpack.c.b16 %v803, %v801
    %932 = vmatprep.subr.bf16.mxu0 %v819
    %933 = vmatpush1.bf16.msra.mxu0 %v818
    %934 = vmatprep.subr.bf16.mxu0 %v817
    %935 = vmatpush1.bf16.msra.mxu0 %v816
    %936 = vmatprep.subr.bf16.mxu0 %v815
    %937 = vmatpush1.bf16.msra.mxu0 %v814
    %938 = vmatprep.subr.bf16.mxu0 %v813
    %939 = vmatpush1.bf16.msra.mxu0 %v812
    %940 = vmatprep.subr.bf16.mxu0 %v811
    %941 = vmatpush1.bf16.msra.mxu0 %v810
    %942 = vmatprep.subr.bf16.mxu0 %v809
    %943 = vmatpush1.bf16.msra.mxu0 %v808
    %944 = vmatprep.subr.bf16.mxu0 %v807
    %945 = vmatpush1.bf16.msra.mxu0 %v806
    %946 = vmatprep.subr.bf16.mxu0 %v805
    %947 = vmatpush1.bf16.msra.mxu0 %v804
    %948 = vmatprep.subr.bf16.mxu0 %v835
    %949 = vmatpush2.bf16.msra.mxu0 %v834
    %950 = vmatprep.subr.bf16.mxu0 %v833
    %951 = vmatpush2.bf16.msra.mxu0 %v832
    %952 = vmatprep.subr.bf16.mxu0 %v831
    %953 = vmatpush2.bf16.msra.mxu0 %v830
    %954 = vmatprep.subr.bf16.mxu0 %v829
    %955 = vmatpush2.bf16.msra.mxu0 %v828
    %956 = vmatprep.subr.bf16.mxu0 %v827
    %957 = vmatpush2.bf16.msra.mxu0 %v826
    %958 = vmatprep.subr.bf16.mxu0 %v825
    %959 = vmatpush2.bf16.msra.mxu0 %v824
    %960 = vmatprep.subr.bf16.mxu0 %v823
    %961 = vmatpush2.bf16.msra.mxu0 %v822
    %962 = vmatprep.subr.bf16.mxu0 %v821
    %963 = vmatpush2.bf16.msra.mxu0 %v820
    %964 = vmatprep.mubr.bf16.mxu0 %v534
    %965 = vmatmul.mubr.bf16.gmra.mxu0 %v533
    %v966 = vpop.f32.mrf.mxu0
    %v967 = vadd.f32 %v605, %v966
    %v968 = vpop.f32.mrf.mxu0
    %v969 = vadd.f32 %v609, %v968
    %v970 = vpop.f32.mrf.mxu0
    %v971 = vpop.f32.mrf.mxu0
    %972 = vdwg.mxu0
    %973 = vmatprep.subr.bf16.mxu0 %v851
    %974 = vmatpush1.bf16.msra.mxu0 %v850
    %975 = vmatprep.subr.bf16.mxu0 %v849
    %976 = vmatpush1.bf16.msra.mxu0 %v848
    %977 = vmatprep.subr.bf16.mxu0 %v847
    %978 = vmatpush1.bf16.msra.mxu0 %v846
    %979 = vmatprep.subr.bf16.mxu0 %v845
    %980 = vmatpush1.bf16.msra.mxu0 %v844
    %981 = vmatprep.subr.bf16.mxu0 %v843
    %982 = vmatpush1.bf16.msra.mxu0 %v842
    %983 = vmatprep.subr.bf16.mxu0 %v841
    %984 = vmatpush1.bf16.msra.mxu0 %v840
    %985 = vmatprep.subr.bf16.mxu0 %v839
    %986 = vmatpush1.bf16.msra.mxu0 %v838
    %987 = vmatprep.subr.bf16.mxu0 %v837
    %988 = vmatpush1.bf16.msra.mxu0 %v836
    %989 = vmatprep.subr.bf16.mxu0 %v867
    %990 = vmatpush2.bf16.msra.mxu0 %v866
    %991 = vmatprep.subr.bf16.mxu0 %v865
    %992 = vmatpush2.bf16.msra.mxu0 %v864
    %993 = vmatprep.subr.bf16.mxu0 %v863
    %994 = vmatpush2.bf16.msra.mxu0 %v862
    %995 = vmatprep.subr.bf16.mxu0 %v861
    %996 = vmatpush2.bf16.msra.mxu0 %v860
    %997 = vmatprep.subr.bf16.mxu0 %v859
    %998 = vmatpush2.bf16.msra.mxu0 %v858
    %999 = vmatprep.subr.bf16.mxu0 %v857
    %1000 = vmatpush2.bf16.msra.mxu0 %v856
    %1001 = vmatprep.subr.bf16.mxu0 %v855
    %1002 = vmatpush2.bf16.msra.mxu0 %v854
    %1003 = vmatprep.subr.bf16.mxu0 %v853
    %1004 = vmatpush2.bf16.msra.mxu0 %v852
    %1005 = vmatprep.mubr.bf16.mxu0 %v536
    %1006 = vmatmul.mubr.bf16.gmra.mxu0 %v535
    %v1007 = vpop.f32.mrf.mxu0
    %v1008 = vadd.f32 %v967, %v1007
    %v1009 = vpop.f32.mrf.mxu0
    %v1010 = vadd.f32 %v969, %v1009
    %v1011 = vpop.f32.mrf.mxu0
    %v1012 = vpop.f32.mrf.mxu0
    %1013 = vdwg.mxu0
    %v1014 = vmax.f32 %v1008, 0.0
    %v1015 = vmax.f32 %v1010, 0.0
    %v1016 = vpack.c.bf16 %v1014, %v1014
    %v1017 = vpack.c.bf16 %v1015, %v1015
    %v1018 = vld [vmem:[#allocation8] sm:$0xff]
    %v1019 = vld [vmem:[#allocation8 + $0x8] sm:$0xff]
    %v1020 = vld [vmem:[#allocation8 + $0x10] sm:$0xff]
    %v1021 = vld [vmem:[#allocation8 + $0x18] sm:$0xff]
    %v1022 = vld [vmem:[#allocation8 + $0x20] sm:$0xff]
    %v1023 = vld [vmem:[#allocation8 + $0x28] sm:$0xff]
    %v1024 = vld [vmem:[#allocation8 + $0x30] sm:$0xff]
    %v1025 = vld [vmem:[#allocation8 + $0x38] sm:$0xff]
    %v1026 = vld [vmem:[#allocation8 + $0x40] sm:$0xff]
    %v1027 = vld [vmem:[#allocation8 + $0x48] sm:$0xff]
    %v1028 = vld [vmem:[#allocation8 + $0x50] sm:$0xff]
    %v1029 = vld [vmem:[#allocation8 + $0x58] sm:$0xff]
    %v1030 = vld [vmem:[#allocation8 + $0x60] sm:$0xff]
    %v1031 = vld [vmem:[#allocation8 + $0x68] sm:$0xff]
    %v1032 = vld [vmem:[#allocation8 + $0x70] sm:$0xff]
    %v1033 = vld [vmem:[#allocation8 + $0x78] sm:$0xff]
    %v1034 = vld [vmem:[#allocation8 + $0x80] sm:$0xff]
    %v1035 = vld [vmem:[#allocation8 + $0x88] sm:$0xff]
    %v1036 = vld [vmem:[#allocation8 + $0x90] sm:$0xff]
    %v1037 = vld [vmem:[#allocation8 + $0x98] sm:$0xff]
    %v1038 = vld [vmem:[#allocation8 + $0xa0] sm:$0xff]
    %v1039 = vld [vmem:[#allocation8 + $0xa8] sm:$0xff]
    %v1040 = vld [vmem:[#allocation8 + $0xb0] sm:$0xff]
    %v1041 = vld [vmem:[#allocation8 + $0xb8] sm:$0xff]
    %v1042 = vld [vmem:[#allocation8 + $0xc0] sm:$0xff]
    %v1043 = vld [vmem:[#allocation8 + $0xc8] sm:$0xff]
    %v1044 = vld [vmem:[#allocation8 + $0xd0] sm:$0xff]
    %v1045 = vld [vmem:[#allocation8 + $0xd8] sm:$0xff]
    %v1046 = vld [vmem:[#allocation8 + $0xe0] sm:$0xff]
    %v1047 = vld [vmem:[#allocation8 + $0xe8] sm:$0xff]
    %v1048 = vld [vmem:[#allocation8 + $0xf0] sm:$0xff]
    %v1049 = vld [vmem:[#allocation8 + $0xf8] sm:$0xff]
    %v1051 = vlaneseq
    %v1052 = vshrl.u32 %v1051, 7
    %v1053 = vsub.s32 0, %v1052
    %v1054 = vrot.slane %v93, %v1053
    %v1055 = vlaneseq
    %v1056 = vshrl.u32 %v1055, 7
    %v1057 = vsub.s32 1, %v1056
    %v1058 = vrot.slane %v93, %v1057
    %v1093 = vunpack.c.l.b16 %v1018
    %v1094 = vunpack.c.h.b16 %v1018
    %v1095 = vunpack.c.l.b16 %v1019
    %v1096 = vunpack.c.h.b16 %v1019
    %v1097 = vunpack.c.l.b16 %v1020
    %v1098 = vunpack.c.h.b16 %v1020
    %v1099 = vunpack.c.l.b16 %v1021
    %v1100 = vunpack.c.h.b16 %v1021
    %v1101 = vunpack.c.l.b16 %v1022
    %v1102 = vunpack.c.h.b16 %v1022
    %v1103 = vunpack.c.l.b16 %v1023
    %v1104 = vunpack.c.h.b16 %v1023
    %v1105 = vunpack.c.l.b16 %v1024
    %v1106 = vunpack.c.h.b16 %v1024
    %v1107 = vunpack.c.l.b16 %v1025
    %v1108 = vunpack.c.h.b16 %v1025
    %v1109 = vunpack.c.l.b16 %v1026
    %v1110 = vunpack.c.h.b16 %v1026
    %v1111 = vunpack.c.l.b16 %v1027
    %v1112 = vunpack.c.h.b16 %v1027
    %v1113 = vunpack.c.l.b16 %v1028
    %v1114 = vunpack.c.h.b16 %v1028
    %v1115 = vunpack.c.l.b16 %v1029
    %v1116 = vunpack.c.h.b16 %v1029
    %v1117 = vunpack.c.l.b16 %v1030
    %v1118 = vunpack.c.h.b16 %v1030
    %v1119 = vunpack.c.l.b16 %v1031
    %v1120 = vunpack.c.h.b16 %v1031
    %v1121 = vunpack.c.l.b16 %v1032
    %v1122 = vunpack.c.h.b16 %v1032
    %v1123 = vunpack.c.l.b16 %v1033
    %v1124 = vunpack.c.h.b16 %v1033
    %v1125 = vunpack.c.l.b16 %v1034
    %v1126 = vunpack.c.h.b16 %v1034
    %v1127 = vunpack.c.l.b16 %v1035
    %v1128 = vunpack.c.h.b16 %v1035
    %v1129 = vunpack.c.l.b16 %v1036
    %v1130 = vunpack.c.h.b16 %v1036
    %v1131 = vunpack.c.l.b16 %v1037
    %v1132 = vunpack.c.h.b16 %v1037
    %v1133 = vunpack.c.l.b16 %v1038
    %v1134 = vunpack.c.h.b16 %v1038
    %v1135 = vunpack.c.l.b16 %v1039
    %v1136 = vunpack.c.h.b16 %v1039
    %v1137 = vunpack.c.l.b16 %v1040
    %v1138 = vunpack.c.h.b16 %v1040
    %v1139 = vunpack.c.l.b16 %v1041
    %v1140 = vunpack.c.h.b16 %v1041
    %v1141 = vunpack.c.l.b16 %v1042
    %v1142 = vunpack.c.h.b16 %v1042
    %v1143 = vunpack.c.l.b16 %v1043
    %v1144 = vunpack.c.h.b16 %v1043
    %v1145 = vunpack.c.l.b16 %v1044
    %v1146 = vunpack.c.h.b16 %v1044
    %v1147 = vunpack.c.l.b16 %v1045
    %v1148 = vunpack.c.h.b16 %v1045
    %v1149 = vunpack.c.l.b16 %v1046
    %v1150 = vunpack.c.h.b16 %v1046
    %v1151 = vunpack.c.l.b16 %v1047
    %v1152 = vunpack.c.h.b16 %v1047
    %v1153 = vunpack.c.l.b16 %v1048
    %v1154 = vunpack.c.h.b16 %v1048
    %v1155 = vunpack.c.l.b16 %v1049
    %v1156 = vunpack.c.h.b16 %v1049
    %v1157 = vpack.c.b16 %v1095, %v1093
    %v1158 = vpack.c.b16 %v1096, %v1094
    %v1159 = vpack.c.b16 %v1099, %v1097
    %v1160 = vpack.c.b16 %v1100, %v1098
    %v1161 = vpack.c.b16 %v1103, %v1101
    %v1162 = vpack.c.b16 %v1104, %v1102
    %v1163 = vpack.c.b16 %v1107, %v1105
    %v1164 = vpack.c.b16 %v1108, %v1106
    %v1165 = vpack.c.b16 %v1111, %v1109
    %v1166 = vpack.c.b16 %v1112, %v1110
    %v1167 = vpack.c.b16 %v1115, %v1113
    %v1168 = vpack.c.b16 %v1116, %v1114
    %v1169 = vpack.c.b16 %v1119, %v1117
    %v1170 = vpack.c.b16 %v1120, %v1118
    %v1171 = vpack.c.b16 %v1123, %v1121
    %v1172 = vpack.c.b16 %v1124, %v1122
    %v1173 = vpack.c.b16 %v1127, %v1125
    %v1174 = vpack.c.b16 %v1128, %v1126
    %v1175 = vpack.c.b16 %v1131, %v1129
    %v1176 = vpack.c.b16 %v1132, %v1130
    %v1177 = vpack.c.b16 %v1135, %v1133
    %v1178 = vpack.c.b16 %v1136, %v1134
    %v1179 = vpack.c.b16 %v1139, %v1137
    %v1180 = vpack.c.b16 %v1140, %v1138
    %v1181 = vpack.c.b16 %v1143, %v1141
    %v1182 = vpack.c.b16 %v1144, %v1142
    %v1183 = vpack.c.b16 %v1147, %v1145
    %v1184 = vpack.c.b16 %v1148, %v1146
    %v1185 = vpack.c.b16 %v1151, %v1149
    %v1186 = vpack.c.b16 %v1152, %v1150
    %v1187 = vpack.c.b16 %v1155, %v1153
    %v1188 = vpack.c.b16 %v1156, %v1154
    %1221 = vmatprep.subr.bf16.mxu0 %v1172
    %1222 = vmatpush1.bf16.msra.mxu0 %v1171
    %1223 = vmatprep.subr.bf16.mxu0 %v1170
    %1224 = vmatpush1.bf16.msra.mxu0 %v1169
    %1225 = vmatprep.subr.bf16.mxu0 %v1168
    %1226 = vmatpush1.bf16.msra.mxu0 %v1167
    %1227 = vmatprep.subr.bf16.mxu0 %v1166
    %1228 = vmatpush1.bf16.msra.mxu0 %v1165
    %1229 = vmatprep.subr.bf16.mxu0 %v1164
    %1230 = vmatpush1.bf16.msra.mxu0 %v1163
    %1231 = vmatprep.subr.bf16.mxu0 %v1162
    %1232 = vmatpush1.bf16.msra.mxu0 %v1161
    %1233 = vmatprep.subr.bf16.mxu0 %v1160
    %1234 = vmatpush1.bf16.msra.mxu0 %v1159
    %1235 = vmatprep.subr.bf16.mxu0 %v1158
    %1236 = vmatpush1.bf16.msra.mxu0 %v1157
    %1237 = vmatprep.subr.bf16.mxu0 %v1188
    %1238 = vmatpush2.bf16.msra.mxu0 %v1187
    %1239 = vmatprep.subr.bf16.mxu0 %v1186
    %1240 = vmatpush2.bf16.msra.mxu0 %v1185
    %1241 = vmatprep.subr.bf16.mxu0 %v1184
    %1242 = vmatpush2.bf16.msra.mxu0 %v1183
    %1243 = vmatprep.subr.bf16.mxu0 %v1182
    %1244 = vmatpush2.bf16.msra.mxu0 %v1181
    %1245 = vmatprep.subr.bf16.mxu0 %v1180
    %1246 = vmatpush2.bf16.msra.mxu0 %v1179
    %1247 = vmatprep.subr.bf16.mxu0 %v1178
    %1248 = vmatpush2.bf16.msra.mxu0 %v1177
    %1249 = vmatprep.subr.bf16.mxu0 %v1176
    %1250 = vmatpush2.bf16.msra.mxu0 %v1175
    %1251 = vmatprep.subr.bf16.mxu0 %v1174
    %1252 = vmatpush2.bf16.msra.mxu0 %v1173
    %1253 = vmatprep.mubr.bf16.mxu0 %v1017
    %1254 = vmatmul.mubr.bf16.gmra.mxu0 %v1016
    %v1255 = vpop.f32.mrf.mxu0
    %v1256 = vadd.f32 %v1054, %v1255
    %v1257 = vpop.f32.mrf.mxu0
    %v1258 = vadd.f32 %v1058, %v1257
    %v1259 = vpop.f32.mrf.mxu0
    %v1260 = vpop.f32.mrf.mxu0
    %1261 = vdwg.mxu0
    %v1262 = vmax.f32 %v1256, 0.0
    %v1263 = vmax.f32 %v1258, 0.0
    %v1264 = vpack.c.bf16 %v1262, %v1262
    %v1265 = vpack.c.bf16 %v1263, %v1263
    %v1266 = vld [vmem:[#allocation10] sm:$0xf]
    %v1267 = vld [vmem:[#allocation10 + $0x4] sm:$0xf]
    %v1268 = vld [vmem:[#allocation10 + $0x8] sm:$0xf]
    %v1269 = vld [vmem:[#allocation10 + $0xc] sm:$0xf]
    %v1270 = vld [vmem:[#allocation10 + $0x10] sm:$0xf]
    %v1271 = vld [vmem:[#allocation10 + $0x14] sm:$0xf]
    %v1272 = vld [vmem:[#allocation10 + $0x18] sm:$0xf]
    %v1273 = vld [vmem:[#allocation10 + $0x1c] sm:$0xf]
    %v1274 = vld [vmem:[#allocation10 + $0x20] sm:$0xf]
    %v1275 = vld [vmem:[#allocation10 + $0x24] sm:$0xf]
    %v1276 = vld [vmem:[#allocation10 + $0x28] sm:$0xf]
    %v1277 = vld [vmem:[#allocation10 + $0x2c] sm:$0xf]
    %v1278 = vld [vmem:[#allocation10 + $0x30] sm:$0xf]
    %v1279 = vld [vmem:[#allocation10 + $0x34] sm:$0xf]
    %v1280 = vld [vmem:[#allocation10 + $0x38] sm:$0xf]
    %v1281 = vld [vmem:[#allocation10 + $0x3c] sm:$0xf]
    %v1282 = vld [vmem:[#allocation10 + $0x40] sm:$0xf]
    %v1283 = vld [vmem:[#allocation10 + $0x44] sm:$0xf]
    %v1284 = vld [vmem:[#allocation10 + $0x48] sm:$0xf]
    %v1285 = vld [vmem:[#allocation10 + $0x4c] sm:$0xf]
    %v1286 = vld [vmem:[#allocation10 + $0x50] sm:$0xf]
    %v1287 = vld [vmem:[#allocation10 + $0x54] sm:$0xf]
    %v1288 = vld [vmem:[#allocation10 + $0x58] sm:$0xf]
    %v1289 = vld [vmem:[#allocation10 + $0x5c] sm:$0xf]
    %v1290 = vld [vmem:[#allocation10 + $0x60] sm:$0xf]
    %v1291 = vld [vmem:[#allocation10 + $0x64] sm:$0xf]
    %v1292 = vld [vmem:[#allocation10 + $0x68] sm:$0xf]
    %v1293 = vld [vmem:[#allocation10 + $0x6c] sm:$0xf]
    %v1294 = vld [vmem:[#allocation10 + $0x70] sm:$0xf]
    %v1295 = vld [vmem:[#allocation10 + $0x74] sm:$0xf]
    %v1296 = vld [vmem:[#allocation10 + $0x78] sm:$0xf]
    %v1297 = vld [vmem:[#allocation10 + $0x7c] sm:$0xf]
    %v1299 = vlaneseq
    %v1300 = vshrl.u32 %v1299, 7
    %v1301 = vsub.s32 0, %v1300
    %v1302 = vrot.slane %v94, %v1301
    %v1336 = vunpack.c.l.b16 %v1266
    %v1337 = vunpack.c.l.b16 %v1267
    %v1338 = vunpack.c.l.b16 %v1268
    %v1339 = vunpack.c.l.b16 %v1269
    %v1340 = vunpack.c.l.b16 %v1270
    %v1341 = vunpack.c.l.b16 %v1271
    %v1342 = vunpack.c.l.b16 %v1272
    %v1343 = vunpack.c.l.b16 %v1273
    %v1344 = vunpack.c.l.b16 %v1274
    %v1345 = vunpack.c.l.b16 %v1275
    %v1346 = vunpack.c.l.b16 %v1276
    %v1347 = vunpack.c.l.b16 %v1277
    %v1348 = vunpack.c.l.b16 %v1278
    %v1349 = vunpack.c.l.b16 %v1279
    %v1350 = vunpack.c.l.b16 %v1280
    %v1351 = vunpack.c.l.b16 %v1281
    %v1352 = vunpack.c.l.b16 %v1282
    %v1353 = vunpack.c.l.b16 %v1283
    %v1354 = vunpack.c.l.b16 %v1284
    %v1355 = vunpack.c.l.b16 %v1285
    %v1356 = vunpack.c.l.b16 %v1286
    %v1357 = vunpack.c.l.b16 %v1287
    %v1358 = vunpack.c.l.b16 %v1288
    %v1359 = vunpack.c.l.b16 %v1289
    %v1360 = vunpack.c.l.b16 %v1290
    %v1361 = vunpack.c.l.b16 %v1291
    %v1362 = vunpack.c.l.b16 %v1292
    %v1363 = vunpack.c.l.b16 %v1293
    %v1364 = vunpack.c.l.b16 %v1294
    %v1365 = vunpack.c.l.b16 %v1295
    %v1366 = vunpack.c.l.b16 %v1296
    %v1367 = vunpack.c.l.b16 %v1297
    %v1368 = vpack.c.b16 %v1337, %v1336
    %v1369 = vpack.c.b16 %v1339, %v1338
    %v1370 = vpack.c.b16 %v1341, %v1340
    %v1371 = vpack.c.b16 %v1343, %v1342
    %v1372 = vpack.c.b16 %v1345, %v1344
    %v1373 = vpack.c.b16 %v1347, %v1346
    %v1374 = vpack.c.b16 %v1349, %v1348
    %v1375 = vpack.c.b16 %v1351, %v1350
    %v1376 = vpack.c.b16 %v1353, %v1352
    %v1377 = vpack.c.b16 %v1355, %v1354
    %v1378 = vpack.c.b16 %v1357, %v1356
    %v1379 = vpack.c.b16 %v1359, %v1358
    %v1380 = vpack.c.b16 %v1361, %v1360
    %v1381 = vpack.c.b16 %v1363, %v1362
    %v1382 = vpack.c.b16 %v1365, %v1364
    %v1383 = vpack.c.b16 %v1367, %v1366
    %1400 = vmatprep.subr.bf16.mxu0 0
    %1401 = vmatpush1.bf16.msra.mxu0 %v1375
    %1402 = vmatprep.subr.bf16.mxu0 0
    %1403 = vmatpush1.bf16.msra.mxu0 %v1374
    %1404 = vmatprep.subr.bf16.mxu0 0
    %1405 = vmatpush1.bf16.msra.mxu0 %v1373
    %1406 = vmatprep.subr.bf16.mxu0 0
    %1407 = vmatpush1.bf16.msra.mxu0 %v1372
    %1408 = vmatprep.subr.bf16.mxu0 0
    %1409 = vmatpush1.bf16.msra.mxu0 %v1371
    %1410 = vmatprep.subr.bf16.mxu0 0
    %1411 = vmatpush1.bf16.msra.mxu0 %v1370
    %1412 = vmatprep.subr.bf16.mxu0 0
    %1413 = vmatpush1.bf16.msra.mxu0 %v1369
    %1414 = vmatprep.subr.bf16.mxu0 0
    %1415 = vmatpush1.bf16.msra.mxu0 %v1368
    %1416 = vmatprep.subr.bf16.mxu0 0
    %1417 = vmatpush2.bf16.msra.mxu0 %v1383
    %1418 = vmatprep.subr.bf16.mxu0 0
    %1419 = vmatpush2.bf16.msra.mxu0 %v1382
    %1420 = vmatprep.subr.bf16.mxu0 0
    %1421 = vmatpush2.bf16.msra.mxu0 %v1381
    %1422 = vmatprep.subr.bf16.mxu0 0
    %1423 = vmatpush2.bf16.msra.mxu0 %v1380
    %1424 = vmatprep.subr.bf16.mxu0 0
    %1425 = vmatpush2.bf16.msra.mxu0 %v1379
    %1426 = vmatprep.subr.bf16.mxu0 0
    %1427 = vmatpush2.bf16.msra.mxu0 %v1378
    %1428 = vmatprep.subr.bf16.mxu0 0
    %1429 = vmatpush2.bf16.msra.mxu0 %v1377
    %1430 = vmatprep.subr.bf16.mxu0 0
    %1431 = vmatpush2.bf16.msra.mxu0 %v1376
    %1432 = vmatprep.mubr.bf16.mxu0 %v1265
    %1433 = vmatmul.mubr.bf16.gmra.mxu0 %v1264
    %v1434 = vpop.f32.mrf.mxu0
    %v1435 = vadd.f32 %v1302, %v1434
    %v1436 = vpop.f32.mrf.mxu0
    %v1437 = vpop.f32.mrf.mxu0
    %v1438 = vpop.f32.mrf.mxu0
    %1439 = vdwg.mxu0
    %vm1440 = vcmask 1041408
    %v1441 = vsel %vm1440, %v1435, 0.0
    %1442 = vadd.xlane.f32.xlu0 %v1441
    %v1443 = vpop.xlane.xlu0 %1442
    %v1444 = vsub.f32 %v1443, %v1435
    %v1445 = vmul.f32 %v1444, 0.14285715
    %v1446 = vsub.f32 %v1435, %v1445
    %1448 = vset.pattern.permute.xlu0 127
    %1449 = vperm.xlu0 %1448, %v1446
    %v1450 = vpop.permute.xlu0 %1449
    %v1452 = vadd.f32 %v1435, %v1450
    %v1453 = vpack.c.bf16 %v1452, %v1452
    %1454 = vst [vmem:[#allocation11] sm:$0x1] %v1453
    // Predicated region
    $region46: #{tpu_custom_call.1} parent=1 // pred_check
      _
    $region47: #{tpu_custom_call.1} parent=1 // pred_check_branch
      %1456 = sbr.rel (0) target = $region49
    $region48: #{tpu_custom_call.1} parent=1 // pred_region
      %s1458 = ssub.s32 16, 16
      %1459 = vsyncadd [#allocation4], %s1458
      %s1461 = sshll.u32 [#allocation11], 4
      %s1462 = int_to_ptr.vmem [resolvable:$true] %s1461
      %1464 = dma.vmem_to_hbm [thread:$0]  %s1462, 16, %s6, [#allocation4]
    $region49: #{tpu_custom_call.1} parent=1 // pred_fallthru
      _
    // Predicated region
    $region50: #{tpu_custom_call.1} parent=1 // pred_check
      _
    $region51: #{tpu_custom_call.1} parent=1 // pred_check_branch
      %1466 = sbr.rel (0) target = $region53
    $region52: #{tpu_custom_call.1} parent=1 // pred_region
      %1467 = dma.done [#allocation4], 16
    $region53: #{tpu_custom_call.1} parent=1 // pred_fallthru
      _
    %1468 = vsyncpa [#allocation3], 1
    %1469 = vsyncpa [#allocation6], 1
    %1470 = vsyncpa [#allocation9], 1
    %1471 = vsyncpa [#allocation4], 1

</llo_original>
